<compile_context>
chip_gen: v6e
topology: v6e:2x2x1
jax: 0.10.0
libtpu: 0.0.40
codegen_flags: <defaults>
</compile_context>

<pallas_src>
import numpy as np
import jax
import jax.numpy as jnp
from jax import lax
from jax.experimental import pallas as pl
from jax.experimental.pallas import tpu as pltpu

LANE = 128      # padded lane width for hidden layers / logits
SUBLANE = 8

# Fast (VMEM-resident table) path limits.
_FAST_TABLE_BYTES = 2 * 1024 * 1024     # table must fit comfortably in VMEM
_FAST_ONEHOT_BYTES = 8 * 1024 * 1024    # S_pad x V_pad one-hot intermediate


def _round_up(x, m):
    return (x + m - 1) // m * m


def _mlp_head(pooled, w1_ref, w2_ref, w3_ref, bias_ref):
    """ReLU(x@W1+b1) -> ReLU(@W2+b2) -> @W3+b3 on 128-lane padded weights."""
    b = bias_ref[...]
    h1 = jnp.maximum(
        jnp.dot(pooled, w1_ref[...], preferred_element_type=jnp.float32)
        + b[0:1, :], 0.0)
    h2 = jnp.maximum(
        jnp.dot(h1, w2_ref[...], preferred_element_type=jnp.float32)
        + b[1:2, :], 0.0)
    return jnp.dot(h2, w3_ref[...], preferred_element_type=jnp.float32) + b[2:3, :]


def _seg_weights(bag_ref, b_pad, ts, base):
    """(B_pad, ts) mean-pool weights: 1/count inside [lo, hi), else 0."""
    lo = bag_ref[:, 0:1]            # (B_pad, 1) f32
    hi = bag_ref[:, 1:2]
    inv = bag_ref[:, 2:3]           # precomputed 1/count (hoisted to host)
    g = (lax.broadcasted_iota(jnp.int32, (b_pad, ts), 1) + base).astype(jnp.float32)
    inside = jnp.logical_and(g >= lo, g < hi)
    return jnp.where(inside, inv, 0.0)


# --------------------------------------------------------------------------
# Fast path: embedding table resident in VMEM (small/medium vocabularies).
# --------------------------------------------------------------------------
def _resident_table_kernel(text_ref,                 # VMEM (S_pad, 1) int32 ids
                           bag_ref,                  # VMEM (B_pad, 3) f32 [lo,hi,1/cnt]
                           wemb_ref,                 # VMEM (V_pad, E)  f32 table
                           w1_ref, w2_ref, w3_ref,   # VMEM padded MLP weights
                           bias_ref,                 # VMEM (3, 128) packed biases
                           out_ref):                 # VMEM (B_pad, 128) f32
    s_pad = text_ref.shape[0]
    v_pad = wemb_ref.shape[0]
    b_pad = out_ref.shape[0]

    ids = text_ref[...]                                               # (S_pad, 1)
    onehot = (lax.broadcasted_iota(jnp.int32, (s_pad, v_pad), 1) == ids
              ).astype(jnp.float32)                                   # (S_pad, V_pad)
    gathered = jnp.dot(onehot, wemb_ref[...],
                       preferred_element_type=jnp.float32)            # (S_pad, E)

    seg = _seg_weights(bag_ref, b_pad, s_pad, 0)                      # (B_pad, S_pad)
    pooled = jnp.dot(seg, gathered, preferred_element_type=jnp.float32)

    out_ref[...] = _mlp_head(pooled, w1_ref, w2_ref, w3_ref,
                             bias_ref).astype(out_ref.dtype)


# --------------------------------------------------------------------------
# Large-vocab path: manual double-buffered HBM row gather (P4 pattern).
# --------------------------------------------------------------------------
def _hbm_gather_kernel(text_ref,                     # SMEM prefetch (S_pad,) int32 ids
                       wemb_hbm,                     # ANY (HBM)     (V, E) f32 table
                       bag_ref,                      # VMEM          (B_pad, 3) f32
                       w1_ref, w2_ref, w3_ref,       # VMEM padded MLP weights
                       bias_ref,                     # VMEM (3, 128)
                       out_ref,                      # VMEM (B_pad, 128)
                       gbuf,                         # scratch VMEM  (2, TS, E)
                       sem,                          # scratch DMA sems (2,)
                       acc_ref):                     # scratch VMEM  (B_pad, E)
    c = pl.program_id(0)
    nc = pl.num_programs(0)
    ts = gbuf.shape[1]
    b_pad = acc_ref.shape[0]

    def fetch_chunk(chunk, slot):
        base = chunk * ts
        def issue(t, carry):                         # moderately-unrolled issue loop
            tok = text_ref[base + t]
            pltpu.make_async_copy(wemb_hbm.at[tok], gbuf.at[slot, t],
                                  sem.at[slot]).start()
            return carry
        lax.fori_loop(0, ts, issue, 0, unroll=min(ts, 8))

    # ---- init accumulator and prime the gather pipeline on the first step ----
    @pl.when(c == 0)
    def _():
        acc_ref[...] = jnp.zeros_like(acc_ref)
        fetch_chunk(0, 0)

    slot = c & 1

    # Issue the NEXT chunk's gathers BEFORE waiting on the current one, so the
    # DMAs overlap this chunk's wait + compute.  Buffer 1-slot (and its
    # semaphore) was fully drained in iteration c-1, so this is safe, and the
    # SMEM id reads for chunk c+1 happen ahead of the .wait().
    @pl.when(c + 1 < nc)
    def _():
        fetch_chunk(c + 1, 1 - slot)

    # One coalesced wait per chunk: all `ts` row copies signal sem[slot] and DMA
    # byte counts add up, so a single (ts, E)-sized wait covers them all.
    pltpu.make_async_copy(gbuf.at[1 - slot], gbuf.at[slot], sem.at[slot]).wait()

    # ---- mean-pool weights for this chunk + one MXU matmul into the accum ----
    seg = _seg_weights(bag_ref, b_pad, ts, c * ts)                    # (B_pad, TS)
    acc_ref[...] += jnp.dot(seg, gbuf[slot],
                            preferred_element_type=jnp.float32)       # (B_pad, E)

    # ---- MLP head on the last chunk (all lane dims padded to 128) ----
    @pl.when(c == nc - 1)
    def _():
        out_ref[...] = _mlp_head(acc_ref[...], w1_ref, w2_ref, w3_ref,
                                 bias_ref).astype(out_ref.dtype)


def text_classification_forward(text, offsets, params, *, chunk_tokens=256,
                                force_gather=False):
    """Pallas forward. text: (S,) token ids; offsets: (B,) sorted, offsets[0]==0.

    chunk_tokens only affects the large-vocab gather path; sweep 128 (v5e) to
    256-512 (v6e/v7x).
    """
    wemb = params["wemb"].astype(jnp.float32)
    w1, b1 = params["w1"], params["b1"]
    w2, b2 = params["w2"], params["b2"]
    w3, b3 = params["w3"], params["b3"]

    S = int(text.shape[0])
    B = int(offsets.shape[0])
    V, E = wemb.shape
    H1, H2, C = w1.shape[1], w2.shape[1], w3.shape[1]
    B_pad = _round_up(B, SUBLANE)
    HP = LANE

    # -- tiny host glue: O(S)+O(B) integer work only (no O(S*V) host one-hot) --
    text_i = jnp.clip(text.astype(jnp.int32), 0, V - 1)   # never DMA/gather OOB rows
    offs = offsets.astype(jnp.int32)
    lo = jnp.full((B_pad,), S, jnp.int32).at[:B].set(offs)
    hi = jnp.full((B_pad,), S, jnp.int32).at[:B].set(
        jnp.concatenate([offs[1:], jnp.array([S], jnp.int32)]))
    inv = 1.0 / jnp.maximum(hi - lo, 1).astype(jnp.float32)
    bag_info = jnp.stack([lo.astype(jnp.float32), hi.astype(jnp.float32), inv],
                         axis=1)                                       # (B_pad, 3)

    # zero-pad the tiny MLP dims to 128 lanes (lane-dense matmuls + stores)
    w1p = jnp.zeros((E, HP), jnp.float32).at[:, :H1].set(w1)
    w2p = jnp.zeros((HP, HP), jnp.float32).at[:H1, :H2].set(w2)
    w3p = jnp.zeros((HP, HP), jnp.float32).at[:H2, :C].set(w3)
    biasp = jnp.zeros((3, HP), jnp.float32)
    biasp = biasp.at[0, :H1].set(b1.reshape(-1))
    biasp = biasp.at[1, :H2].set(b2.reshape(-1))
    biasp = biasp.at[2, :C].set(b3.reshape(-1))

    # TODO(synk): stream the embedding table in bfloat16 on v6e/v7x to halve HBM
    # bytes; kept f32 so the strict 1e-4 f32 check against the reference holds.

    s_pad8 = _round_up(max(S, 1), SUBLANE)
    fast_ok = (not force_gather
               and V * E * 4 <= _FAST_TABLE_BYTES
               and s_pad8 * _round_up(V, LANE) * 4 <= _FAST_ONEHOT_BYTES)

    if fast_ok:
        # ---- fast path: one-shot kernel with the table resident in VMEM ----
        V_pad = _round_up(V, LANE)
        wemb_p = jnp.zeros((V_pad, E), jnp.float32).at[:V, :].set(wemb)
        text_col = jnp.zeros((s_pad8, 1), jnp.int32).at[:S, 0].set(text_i)
        out_padded = pl.pallas_call(
            _resident_table_kernel,
            out_shape=jax.ShapeDtypeStruct((B_pad, HP), jnp.float32),
        )(text_col, bag_info, wemb_p, w1p, w2p, w3p, biasp)
        return out_padded[:B, :C]

    # ---- large-vocab path: double-buffered HBM row gather over token chunks ----
    TS = max(int(chunk_tokens), SUBLANE)
    S_pad = _round_up(max(S, 1), TS)
    num_chunks = S_pad // TS
    text_pad = jnp.zeros((S_pad,), jnp.int32).at[:S].set(text_i)

    # TODO(synk): mark the constant-index weight/bias/bag specs with
    # pipeline_mode=pl.Buffered(1) and add a leading 'parallel' bag axis to use
    # the second v7x TensorCore; both omitted here to keep the kernel portable.
    grid_spec = pltpu.PrefetchScalarGridSpec(
        num_scalar_prefetch=1,                       # token ids -> SMEM
        grid=(num_chunks,),
        in_specs=[
            pl.BlockSpec(memory_space=pl.ANY),                   # wemb stays in HBM
            pl.BlockSpec((B_pad, 3), lambda c, text: (0, 0)),    # bag [lo,hi,1/cnt]
            pl.BlockSpec((E, HP), lambda c, text: (0, 0)),       # w1 (padded)
            pl.BlockSpec((HP, HP), lambda c, text: (0, 0)),      # w2 (padded)
            pl.BlockSpec((HP, HP), lambda c, text: (0, 0)),      # w3 (padded)
            pl.BlockSpec((3, HP), lambda c, text: (0, 0)),       # packed biases
        ],
        out_specs=pl.BlockSpec((B_pad, HP), lambda c, text: (0, 0)),
        scratch_shapes=[
            pltpu.VMEM((2, TS, E), jnp.float32),     # double-buffered gather rows
            pltpu.SemaphoreType.DMA((2,)),           # ONE coalesced sem per slot
            pltpu.VMEM((B_pad, E), jnp.float32),     # pooled accumulator
        ],
    )

    out_padded = pl.pallas_call(
        _hbm_gather_kernel,
        out_shape=jax.ShapeDtypeStruct((B_pad, HP), jnp.float32),
        grid_spec=grid_spec,
        compiler_params=pltpu.CompilerParams(
            dimension_semantics=("arbitrary",),      # token-chunk axis is a reduction
            vmem_limit_bytes=32 * 1024 * 1024),
    )(text_pad, wemb, bag_info, w1p, w2p, w3p, biasp)
    return out_padded[:B, :C]


def init_params(key, vocab_size, embed_dim, num_class):
    """Matches TextClassificationModel.init_weights(): U(-0.5, 0.5) weights, zero biases."""
    initrange = 0.5
    k0, k1, k2, k3 = jax.random.split(key, 4)
    u = lambda k, shape: jax.random.uniform(k, shape, jnp.float32, -initrange, initrange)
    return {
        "wemb": u(k0, (vocab_size, embed_dim)),
        # Linear weights stored pre-transposed: (in, out)
        "w1": u(k1, (embed_dim, 64)), "b1": jnp.zeros((1, 64), jnp.float32),
        "w2": u(k2, (64, 16)),        "b2": jnp.zeros((1, 16), jnp.float32),
        "w3": u(k3, (16, num_class)), "b3": jnp.zeros((1, num_class), jnp.float32),
    }


def reference_forward(text, offsets, params):
    """Pure-JAX reference (mirrors PyTorch EmbeddingBag(mode='mean') + MLP)."""
    wemb = params["wemb"]
    S = text.shape[0]
    B = offsets.shape[0]
    bag_id = jnp.searchsorted(offsets, jnp.arange(S), side="right") - 1
    emb = wemb[text]                                                  # (S, E)
    sums = jnp.zeros((B, wemb.shape[1])).at[bag_id].add(emb)
    counts = jnp.maximum(jnp.zeros((B,)).at[bag_id].add(1.0), 1.0)
    pooled = sums / counts[:, None]
    h1 = jax.nn.relu(pooled @ params["w1"] + params["b1"])
    h2 = jax.nn.relu(h1 @ params["w2"] + params["b2"])
    return h2 @ params["w3"] + params["b3"]


if __name__ == "__main__":
    vocab_size, embed_dim, num_class = 50, 32, 4

    key = jax.random.PRNGKey(0)
    kp, kt = jax.random.split(key)
    params = init_params(kp, vocab_size, embed_dim, num_class)

    # Flat stream of 24 token ids split into 3 bags: [0:5), [5:13), [13:24).
    seq_total = 24
    text = jax.random.randint(kt, (seq_total,), 0, vocab_size, dtype=jnp.int32)
    offsets = jnp.array([0, 5, 13], dtype=jnp.int32)

    ref = reference_forward(text, offsets, params)

    # 1) Fast path (VMEM-resident table) — auto-selected for this small vocab.
    out = text_classification_forward(text, offsets, params)
    out = jax.block_until_ready(out)
    np.testing.assert_allclose(np.asarray(out), np.asarray(ref), rtol=1e-4, atol=1e-4)
    assert out.shape == (offsets.shape[0], num_class)

    # 2) Large-vocab path (HBM gather, double-buffered, coalesced waits),
    #    forced with small chunks so the pipeline (3 chunks) is exercised.
    out_g = text_classification_forward(text, offsets, params,
                                        force_gather=True, chunk_tokens=8)
    out_g = jax.block_until_ready(out_g)
    np.testing.assert_allclose(np.asarray(out_g), np.asarray(ref), rtol=1e-4, atol=1e-4)

    print("KERNEL_OK")
</pallas_src>

<mosaic_0001>
module attributes {stable_mosaic.version = 11 : i64} {
  func.func @_resident_table_kernel(%arg0: memref<24x1xi32, #tpu.memory_space<vmem>>, %arg1: memref<8x3xf32, #tpu.memory_space<vmem>>, %arg2: memref<128x32xf32, #tpu.memory_space<vmem>>, %arg3: memref<32x128xf32, #tpu.memory_space<vmem>>, %arg4: memref<128x128xf32, #tpu.memory_space<vmem>>, %arg5: memref<128x128xf32, #tpu.memory_space<vmem>>, %arg6: memref<3x128xf32, #tpu.memory_space<vmem>>, %arg7: memref<8x128xf32, #tpu.memory_space<vmem>>) attributes {dimension_semantics = [], scalar_prefetch = 0 : i64, scratch_operands = 0 : i64, tpu.core_type = #tpu.core_type<tc>} {
    %c0 = arith.constant 0 : index
    %c0_0 = arith.constant 0 : index
    %0 = vector.load %arg0[%c0, %c0_0] : memref<24x1xi32, #tpu.memory_space<vmem>>, vector<24x1xi32>
    %1 = tpu.iota {dimensions = array<i32: 1>} : vector<24x128xi32>
    %2 = vector.broadcast %0 : vector<24x1xi32> to vector<24x128xi32>
    %3 = arith.cmpi eq, %1, %2 : vector<24x128xi32>
    %4 = arith.extui %3 : vector<24x128xi1> to vector<24x128xi32>
    %5 = arith.sitofp %4 : vector<24x128xi32> to vector<24x128xf32>
    %c0_1 = arith.constant 0 : index
    %c0_2 = arith.constant 0 : index
    %6 = vector.load %arg2[%c0_1, %c0_2] : memref<128x32xf32, #tpu.memory_space<vmem>>, vector<128x32xf32>
    %cst = arith.constant dense<0.000000e+00> : vector<24x32xf32>
    %7 = tpu.matmul %5, %6, %cst {dimension_numbers = #tpu.dot_dimension_numbers<[1], [0], [0], [1], [0, 0, 1, 1], [], []>} : vector<24x128xf32>, vector<128x32xf32>, vector<24x32xf32> -> vector<24x32xf32>
    %c0_3 = arith.constant 0 : index
    %c0_4 = arith.constant 0 : index
    %8 = vector.load %arg1[%c0_3, %c0_4] : memref<8x3xf32, #tpu.memory_space<vmem>>, vector<8x1xf32>
    %c0_5 = arith.constant 0 : index
    %c1 = arith.constant 1 : index
    %9 = vector.load %arg1[%c0_5, %c1] : memref<8x3xf32, #tpu.memory_space<vmem>>, vector<8x1xf32>
    %c0_6 = arith.constant 0 : index
    %c2 = arith.constant 2 : index
    %10 = vector.load %arg1[%c0_6, %c2] : memref<8x3xf32, #tpu.memory_space<vmem>>, vector<8x1xf32>
    %11 = tpu.iota {dimensions = array<i32: 1>} : vector<8x24xi32>
    %c0_i32 = arith.constant 0 : i32
    %12 = vector.broadcast %c0_i32 : i32 to vector<8x24xi32>
    %13 = arith.addi %11, %12 : vector<8x24xi32>
    %14 = arith.sitofp %13 : vector<8x24xi32> to vector<8x24xf32>
    %15 = vector.broadcast %8 : vector<8x1xf32> to vector<8x24xf32>
    %16 = arith.cmpf oge, %14, %15 : vector<8x24xf32>
    %17 = vector.broadcast %9 : vector<8x1xf32> to vector<8x24xf32>
    %18 = arith.cmpf olt, %14, %17 : vector<8x24xf32>
    %19 = arith.andi %16, %18 : vector<8x24xi1>
    %cst_7 = arith.constant 0.000000e+00 : f32
    %20 = vector.shape_cast %10 : vector<8x1xf32> to vector<8x1xf32>
    %21 = vector.broadcast %20 : vector<8x1xf32> to vector<8x24xf32>
    %22 = vector.broadcast %cst_7 : f32 to vector<8x24xf32>
    %23 = arith.select %19, %21, %22 : vector<8x24xi1>, vector<8x24xf32>
    %cst_8 = arith.constant dense<0.000000e+00> : vector<8x32xf32>
    %24 = tpu.matmul %23, %7, %cst_8 {dimension_numbers = #tpu.dot_dimension_numbers<[1], [0], [0], [1], [0, 0, 1, 1], [], []>} : vector<8x24xf32>, vector<24x32xf32>, vector<8x32xf32> -> vector<8x32xf32>
    %c0_9 = arith.constant 0 : index
    %c0_10 = arith.constant 0 : index
    %25 = vector.load %arg6[%c0_9, %c0_10] : memref<3x128xf32, #tpu.memory_space<vmem>>, vector<3x128xf32>
    %c0_11 = arith.constant 0 : index
    %c0_12 = arith.constant 0 : index
    %26 = vector.load %arg3[%c0_11, %c0_12] : memref<32x128xf32, #tpu.memory_space<vmem>>, vector<32x128xf32>
    %cst_13 = arith.constant dense<0.000000e+00> : vector<8x128xf32>
    %27 = tpu.matmul %24, %26, %cst_13 {dimension_numbers = #tpu.dot_dimension_numbers<[1], [0], [0], [1], [0, 0, 1, 1], [], []>} : vector<8x32xf32>, vector<32x128xf32>, vector<8x128xf32> -> vector<8x128xf32>
    %28 = vector.extract_strided_slice %25 {offsets = [0, 0], sizes = [1, 128], strides = [1, 1]} : vector<3x128xf32> to vector<1x128xf32>
    %29 = vector.broadcast %28 : vector<1x128xf32> to vector<8x128xf32>
    %30 = arith.addf %27, %29 : vector<8x128xf32>
    %cst_14 = arith.constant 0.000000e+00 : f32
    %31 = vector.broadcast %cst_14 : f32 to vector<8x128xf32>
    %32 = arith.maximumf %30, %31 : vector<8x128xf32>
    %c0_15 = arith.constant 0 : index
    %c0_16 = arith.constant 0 : index
    %33 = vector.load %arg4[%c0_15, %c0_16] : memref<128x128xf32, #tpu.memory_space<vmem>>, vector<128x128xf32>
    %cst_17 = arith.constant dense<0.000000e+00> : vector<8x128xf32>
    %34 = tpu.matmul %32, %33, %cst_17 {dimension_numbers = #tpu.dot_dimension_numbers<[1], [0], [0], [1], [0, 0, 1, 1], [], []>} : vector<8x128xf32>, vector<128x128xf32>, vector<8x128xf32> -> vector<8x128xf32>
    %35 = vector.extract_strided_slice %25 {offsets = [1, 0], sizes = [1, 128], strides = [1, 1]} : vector<3x128xf32> to vector<1x128xf32>
    %36 = vector.broadcast %35 : vector<1x128xf32> to vector<8x128xf32>
    %37 = arith.addf %34, %36 : vector<8x128xf32>
    %cst_18 = arith.constant 0.000000e+00 : f32
    %38 = vector.broadcast %cst_18 : f32 to vector<8x128xf32>
    %39 = arith.maximumf %37, %38 : vector<8x128xf32>
    %c0_19 = arith.constant 0 : index
    %c0_20 = arith.constant 0 : index
    %40 = vector.load %arg5[%c0_19, %c0_20] : memref<128x128xf32, #tpu.memory_space<vmem>>, vector<128x128xf32>
    %cst_21 = arith.constant dense<0.000000e+00> : vector<8x128xf32>
    %41 = tpu.matmul %39, %40, %cst_21 {dimension_numbers = #tpu.dot_dimension_numbers<[1], [0], [0], [1], [0, 0, 1, 1], [], []>} : vector<8x128xf32>, vector<128x128xf32>, vector<8x128xf32> -> vector<8x128xf32>
    %42 = vector.extract_strided_slice %25 {offsets = [2, 0], sizes = [1, 128], strides = [1, 1]} : vector<3x128xf32> to vector<1x128xf32>
    %43 = vector.broadcast %42 : vector<1x128xf32> to vector<8x128xf32>
    %44 = arith.addf %41, %43 : vector<8x128xf32>
    %c0_22 = arith.constant 0 : index
    %c0_23 = arith.constant 0 : index
    %45 = vector.load %arg7[%c0_22, %c0_23] : memref<8x128xf32, #tpu.memory_space<vmem>>, vector<8x128xf32>
    tpu.vector_store %arg7[%c0_22, %c0_23], %44 {strides = array<i32>} : memref<8x128xf32, #tpu.memory_space<vmem>>, vector<8x128xf32>,
    return
  }
}

</mosaic_0001>

<llo_original>
// kernel: tpu_custom_call.1
$region0: #{tpu_custom_call.1}
  #allocation0 [shape = 'u32[]', space=smem, size = 0x4, offset = 0x4, fixed_abs, tag = 'smem constant byte address 0x4 - core index']
  #allocation1 [shape = 'u32[144,128]{1,0:T(1,128)}', space=vmem, size = 0x12000, scoped, tag = 'internal scratch']
  %s0 = inlined_call_operand.vmem [shape: s32[24,1], index: 0, kind: input, shape index: {}]
  %s1 = inlined_call_operand.vmem [shape: f32[8,3], index: 1, kind: input, shape index: {}]
  %s2 = inlined_call_operand.vmem [shape: f32[128,32], index: 2, kind: input, shape index: {}]
  %s3 = inlined_call_operand.vmem [shape: f32[32,128], index: 3, kind: input, shape index: {}]
  %s4 = inlined_call_operand.vmem [shape: f32[128,128], index: 4, kind: input, shape index: {}]
  %s5 = inlined_call_operand.hbm [shape: f32[128,128], index: 5, kind: input, shape index: {}]
  %s6 = inlined_call_operand.vmem [shape: f32[3,128], index: 6, kind: input, shape index: {}]
  %s7 = inlined_call_operand.hbm [shape: f32[8,128], index: 7, kind: output, shape index: {}]
  %s8 = sld [smem:[#allocation0]]
  $region42: #{tpu_custom_call.1} parent=0
    _
  %s10 = ssub.s32 1, %s8
  %s11 = scalar_select 0, %s10, %s8
  $region1: #{tpu_custom_call.1} parent=0
    #allocation2 [shape = 'u8[65536]{0}', space=vmem, size = 0x10000, scoped, tag = 'input window, operand 5, single buffered']
    #allocation3 [shape = 's32[1]{0}', space=sflag, size = 0x4, scoped, tag = 'scoped memory for tpu_custom_call.1']
    #allocation4 [shape = 's32[1]{0}', space=sflag, size = 0x4, scoped, tag = 'scoped memory for tpu_custom_call.1']
    #allocation5 [shape = 'u8[4096]{0}', space=vmem, size = 0x1000, scoped, tag = 'output window, operand 0, single buffered']
    %12 = vsyncpa [#allocation3], 0
    %13 = vsyncpa [#allocation4], 0
    // Predicated region
    $region2: #{tpu_custom_call.1} parent=1 // pred_check
      _
    $region3: #{tpu_custom_call.1} parent=1 // pred_check_branch
      %15 = sbr.rel (0) target = $region5
    $region4: #{tpu_custom_call.1} parent=1 // pred_region
      _
    $region5: #{tpu_custom_call.1} parent=1 // pred_fallthru
      _
    // Predicated region
    $region6: #{tpu_custom_call.1} parent=1 // pred_check
      _
    $region7: #{tpu_custom_call.1} parent=1 // pred_check_branch
      %17 = sbr.rel (0) target = $region9
    $region8: #{tpu_custom_call.1} parent=1 // pred_region
      _
    $region9: #{tpu_custom_call.1} parent=1 // pred_fallthru
      _
    // Predicated region
    $region10: #{tpu_custom_call.1} parent=1 // pred_check
      _
    $region11: #{tpu_custom_call.1} parent=1 // pred_check_branch
      %19 = sbr.rel (0) target = $region13
    $region12: #{tpu_custom_call.1} parent=1 // pred_region
      _
    $region13: #{tpu_custom_call.1} parent=1 // pred_fallthru
      _
    // Predicated region
    $region14: #{tpu_custom_call.1} parent=1 // pred_check
      _
    $region15: #{tpu_custom_call.1} parent=1 // pred_check_branch
      %21 = sbr.rel (0) target = $region17
    $region16: #{tpu_custom_call.1} parent=1 // pred_region
      _
    $region17: #{tpu_custom_call.1} parent=1 // pred_fallthru
      _
    // Predicated region
    $region18: #{tpu_custom_call.1} parent=1 // pred_check
      _
    $region19: #{tpu_custom_call.1} parent=1 // pred_check_branch
      %23 = sbr.rel (0) target = $region21
    $region20: #{tpu_custom_call.1} parent=1 // pred_region
      _
    $region21: #{tpu_custom_call.1} parent=1 // pred_fallthru
      _
    // Predicated region
    $region22: #{tpu_custom_call.1} parent=1 // pred_check
      _
    $region23: #{tpu_custom_call.1} parent=1 // pred_check_branch
      %25 = sbr.rel (0) target = $region25
    $region24: #{tpu_custom_call.1} parent=1 // pred_region
      %s27 = ssub.s32 2048, 2048
      %28 = vsyncadd [#allocation3], %s27
      %s29 = sshll.u32 [#allocation2], 4
      %s30 = int_to_ptr.vmem [resolvable:$true] %s29
      %35 = dma.hbm_to_vmem [thread:$0]  %s5, 2048, %s30, [#allocation3], 128, 128, 8
    $region25: #{tpu_custom_call.1} parent=1 // pred_fallthru
      _
    // Predicated region
    $region26: #{tpu_custom_call.1} parent=1 // pred_check
      _
    $region27: #{tpu_custom_call.1} parent=1 // pred_check_branch
      %37 = sbr.rel (0) target = $region29
    $region28: #{tpu_custom_call.1} parent=1 // pred_region
      _
    $region29: #{tpu_custom_call.1} parent=1 // pred_fallthru
      _
    // Predicated region
    $region30: #{tpu_custom_call.1} parent=1 // pred_check
      _
    $region31: #{tpu_custom_call.1} parent=1 // pred_check_branch
      %39 = sbr.rel (0) target = $region33
    $region32: #{tpu_custom_call.1} parent=1 // pred_region
      %40 = dma.done [#allocation3], 2048
    $region33: #{tpu_custom_call.1} parent=1 // pred_fallthru
      _
    %v41 = vld [vmem:[%s0] sm:$0xff]
    %v42 = vld [vmem:[%s0 + $0x8] sm:$0xff]
    %v43 = vld [vmem:[%s0 + $0x10] sm:$0xff]
    %v44 = vlaneseq
    %v45 = vand.u32 %v44, 127
    %46 = vset.pattern.permute.xlu0 0
    %47 = vperm.xlu0 %46, %v41
    %v48 = vpop.permute.xlu0 %47
    %49 = vset.pattern.permute.xlu0 0
    %50 = vperm.xlu0 %49, %v42
    %v51 = vpop.permute.xlu0 %50
    %52 = vset.pattern.permute.xlu0 0
    %53 = vperm.xlu0 %52, %v43
    %v54 = vpop.permute.xlu0 %53
    %vm55 = vcmp.eq.s32.totalorder %v45, %v48
    %vm56 = vcmp.eq.s32.totalorder %v45, %v51
    %vm57 = vcmp.eq.s32.totalorder %v45, %v54
    %v58 = vsel %vm55, 1, 0
    %v59 = vsel %vm56, 1, 0
    %v60 = vsel %vm57, 1, 0
    %v61 = vcvt.s32.f32 %v58
    %v62 = vcvt.s32.f32 %v59
    %v63 = vcvt.s32.f32 %v60
    %v64 = vld [vmem:[%s2] sm:$0xff]
    %v65 = vld [vmem:[%s2 + $0x8] sm:$0xff]
    %v66 = vld [vmem:[%s2 + $0x10] sm:$0xff]
    %v67 = vld [vmem:[%s2 + $0x18] sm:$0xff]
    %v68 = vld [vmem:[%s2 + $0x20] sm:$0xff]
    %v69 = vld [vmem:[%s2 + $0x28] sm:$0xff]
    %v70 = vld [vmem:[%s2 + $0x30] sm:$0xff]
    %v71 = vld [vmem:[%s2 + $0x38] sm:$0xff]
    %v72 = vld [vmem:[%s2 + $0x40] sm:$0xff]
    %v73 = vld [vmem:[%s2 + $0x48] sm:$0xff]
    %v74 = vld [vmem:[%s2 + $0x50] sm:$0xff]
    %v75 = vld [vmem:[%s2 + $0x58] sm:$0xff]
    %v76 = vld [vmem:[%s2 + $0x60] sm:$0xff]
    %v77 = vld [vmem:[%s2 + $0x68] sm:$0xff]
    %v78 = vld [vmem:[%s2 + $0x70] sm:$0xff]
    %v79 = vld [vmem:[%s2 + $0x78] sm:$0xff]
    %80 = vmatprep.subr.mxu0 0.0
    %81 = vmatpush1.msra.mxu0 %v79
    %82 = vmatprep.subr.mxu0 0.0
    %83 = vmatpush1.msra.mxu0 %v78
    %84 = vmatprep.subr.mxu0 0.0
    %85 = vmatpush1.msra.mxu0 %v77
    %86 = vmatprep.subr.mxu0 0.0
    %87 = vmatpush1.msra.mxu0 %v76
    %88 = vmatprep.subr.mxu0 0.0
    %89 = vmatpush1.msra.mxu0 %v75
    %90 = vmatprep.subr.mxu0 0.0
    %91 = vmatpush1.msra.mxu0 %v74
    %92 = vmatprep.subr.mxu0 0.0
    %93 = vmatpush1.msra.mxu0 %v73
    %94 = vmatprep.subr.mxu0 0.0
    %95 = vmatpush1.msra.mxu0 %v72
    %96 = vmatprep.subr.mxu0 0.0
    %97 = vmatpush1.msra.mxu0 %v71
    %98 = vmatprep.subr.mxu0 0.0
    %99 = vmatpush1.msra.mxu0 %v70
    %100 = vmatprep.subr.mxu0 0.0
    %101 = vmatpush1.msra.mxu0 %v69
    %102 = vmatprep.subr.mxu0 0.0
    %103 = vmatpush1.msra.mxu0 %v68
    %104 = vmatprep.subr.mxu0 0.0
    %105 = vmatpush1.msra.mxu0 %v67
    %106 = vmatprep.subr.mxu0 0.0
    %107 = vmatpush1.msra.mxu0 %v66
    %108 = vmatprep.subr.mxu0 0.0
    %109 = vmatpush1.msra.mxu0 %v65
    %110 = vmatprep.subr.mxu0 0.0
    %111 = vmatpush1.msra.mxu0 %v64
    %112 = vmatprep.subr.mxu0 0.0
    %113 = vmatpush2.msra.mxu0 0.0
    %114 = vmatprep.subr.mxu0 0.0
    %115 = vmatpush2.msra.mxu0 0.0
    %116 = vmatprep.subr.mxu0 0.0
    %117 = vmatpush2.msra.mxu0 0.0
    %118 = vmatprep.subr.mxu0 0.0
    %119 = vmatpush2.msra.mxu0 0.0
    %120 = vmatprep.subr.mxu0 0.0
    %121 = vmatpush2.msra.mxu0 0.0
    %122 = vmatprep.subr.mxu0 0.0
    %123 = vmatpush2.msra.mxu0 0.0
    %124 = vmatprep.subr.mxu0 0.0
    %125 = vmatpush2.msra.mxu0 0.0
    %126 = vmatprep.subr.mxu0 0.0
    %127 = vmatpush2.msra.mxu0 0.0
    %128 = vmatprep.subr.mxu0 0.0
    %129 = vmatpush2.msra.mxu0 0.0
    %130 = vmatprep.subr.mxu0 0.0
    %131 = vmatpush2.msra.mxu0 0.0
    %132 = vmatprep.subr.mxu0 0.0
    %133 = vmatpush2.msra.mxu0 0.0
    %134 = vmatprep.subr.mxu0 0.0
    %135 = vmatpush2.msra.mxu0 0.0
    %136 = vmatprep.subr.mxu0 0.0
    %137 = vmatpush2.msra.mxu0 0.0
    %138 = vmatprep.subr.mxu0 0.0
    %139 = vmatpush2.msra.mxu0 0.0
    %140 = vmatprep.subr.mxu0 0.0
    %141 = vmatpush2.msra.mxu0 0.0
    %142 = vmatprep.subr.mxu0 0.0
    %143 = vmatpush2.msra.mxu0 0.0
    %144 = vmatprep.mubr.f32.mxu0 0.0
    %145 = vmatmul.mubr.f32.gmra.mxu0 %v61
    %v146 = vpop.f32.mrf.mxu0
    %v147 = vadd.f32 0.0, %v146
    %v148 = vpop.f32.mrf.mxu0
    %149 = vmatprep.mubr.f32.mxu0 0.0
    %150 = vmatmul.mubr.f32.gmra.mxu0 %v62
    %v151 = vpop.f32.mrf.mxu0
    %v152 = vadd.f32 0.0, %v151
    %v153 = vpop.f32.mrf.mxu0
    %154 = vmatprep.mubr.f32.mxu0 0.0
    %155 = vmatmul.mubr.f32.gmra.mxu0 %v63
    %v156 = vpop.f32.mrf.mxu0
    %v157 = vadd.f32 0.0, %v156
    %v158 = vpop.f32.mrf.mxu0
    %159 = vdwg.mxu0
    %v160 = vld [vmem:[%s1] sm:$0xff]
    %v161 = vcvt.s32.f32 %v45
    %163 = vset.pattern.permute.xlu0 0
    %164 = vperm.xlu0 %163, %v160
    %v165 = vpop.permute.xlu0 %164
    %vm167 = vcmp.ge.f32.partialorder %v161, %v165
    %168 = vset.pattern.permute.xlu0 1
    %169 = vperm.xlu0 %168, %v160
    %v170 = vpop.permute.xlu0 %169
    %vm172 = vcmp.lt.f32.partialorder %v161, %v170
    %vm173 = vmand %vm167, %vm172
    %174 = vset.pattern.permute.xlu0 2
    %175 = vperm.xlu0 %174, %v160
    %v176 = vpop.permute.xlu0 %175
    %v178 = vsel %vm173, %v176, 0.0
    %vm179 = vcmask 195584
    %v181 = vsel %vm179, %v178, 0
    %183 = vmatprep.subr.mxu0 0.0
    %184 = vmatpush1.msra.mxu0 0.0
    %185 = vmatprep.subr.mxu0 0.0
    %186 = vmatpush1.msra.mxu0 0.0
    %187 = vmatprep.subr.mxu0 0.0
    %188 = vmatpush1.msra.mxu0 0.0
    %189 = vmatprep.subr.mxu0 0.0
    %190 = vmatpush1.msra.mxu0 0.0
    %191 = vmatprep.subr.mxu0 0.0
    %192 = vmatpush1.msra.mxu0 0.0
    %193 = vmatprep.subr.mxu0 0.0
    %194 = vmatpush1.msra.mxu0 0.0
    %195 = vmatprep.subr.mxu0 0.0
    %196 = vmatpush1.msra.mxu0 0.0
    %197 = vmatprep.subr.mxu0 0.0
    %198 = vmatpush1.msra.mxu0 0.0
    %199 = vmatprep.subr.mxu0 0.0
    %200 = vmatpush1.msra.mxu0 0.0
    %201 = vmatprep.subr.mxu0 0.0
    %202 = vmatpush1.msra.mxu0 0.0
    %203 = vmatprep.subr.mxu0 0.0
    %204 = vmatpush1.msra.mxu0 0.0
    %205 = vmatprep.subr.mxu0 0.0
    %206 = vmatpush1.msra.mxu0 0.0
    %207 = vmatprep.subr.mxu0 0.0
    %208 = vmatpush1.msra.mxu0 0.0
    %209 = vmatprep.subr.mxu0 0.0
    %210 = vmatpush1.msra.mxu0 %v157
    %211 = vmatprep.subr.mxu0 0.0
    %212 = vmatpush1.msra.mxu0 %v152
    %213 = vmatprep.subr.mxu0 0.0
    %214 = vmatpush1.msra.mxu0 %v147
    %215 = vmatprep.subr.mxu0 0.0
    %216 = vmatpush2.msra.mxu0 0.0
    %217 = vmatprep.subr.mxu0 0.0
    %218 = vmatpush2.msra.mxu0 0.0
    %219 = vmatprep.subr.mxu0 0.0
    %220 = vmatpush2.msra.mxu0 0.0
    %221 = vmatprep.subr.mxu0 0.0
    %222 = vmatpush2.msra.mxu0 0.0
    %223 = vmatprep.subr.mxu0 0.0
    %224 = vmatpush2.msra.mxu0 0.0
    %225 = vmatprep.subr.mxu0 0.0
    %226 = vmatpush2.msra.mxu0 0.0
    %227 = vmatprep.subr.mxu0 0.0
    %228 = vmatpush2.msra.mxu0 0.0
    %229 = vmatprep.subr.mxu0 0.0
    %230 = vmatpush2.msra.mxu0 0.0
    %231 = vmatprep.subr.mxu0 0.0
    %232 = vmatpush2.msra.mxu0 0.0
    %233 = vmatprep.subr.mxu0 0.0
    %234 = vmatpush2.msra.mxu0 0.0
    %235 = vmatprep.subr.mxu0 0.0
    %236 = vmatpush2.msra.mxu0 0.0
    %237 = vmatprep.subr.mxu0 0.0
    %238 = vmatpush2.msra.mxu0 0.0
    %239 = vmatprep.subr.mxu0 0.0
    %240 = vmatpush2.msra.mxu0 0.0
    %241 = vmatprep.subr.mxu0 0.0
    %242 = vmatpush2.msra.mxu0 0.0
    %243 = vmatprep.subr.mxu0 0.0
    %244 = vmatpush2.msra.mxu0 0.0
    %245 = vmatprep.subr.mxu0 0.0
    %246 = vmatpush2.msra.mxu0 0.0
    %247 = vmatprep.mubr.f32.mxu0 0.0
    %248 = vmatmul.mubr.f32.gmra.mxu0 %v181
    %v249 = vpop.f32.mrf.mxu0
    %v250 = vadd.f32 0.0, %v249
    %v251 = vpop.f32.mrf.mxu0
    %252 = vdwg.mxu0
    %v253 = vld [vmem:[%s6] sm:$0x7]
    %v254 = vld [vmem:[%s3] sm:$0xff]
    %v255 = vld [vmem:[%s3 + $0x8] sm:$0xff]
    %v256 = vld [vmem:[%s3 + $0x10] sm:$0xff]
    %v257 = vld [vmem:[%s3 + $0x18] sm:$0xff]
    %v258 = vlaneseq
    %v259 = vshrl.u32 %v258, 7
    %v260 = vsub.s32 0, %v259
    %v261 = vrot.slane %v253, %v260
    %vm262 = vcmask 261120
    %v264 = vsel %vm262, %v250, 0
    %266 = vmatprep.subr.mxu0 0.0
    %267 = vmatpush1.msra.mxu0 0.0
    %268 = vmatprep.subr.mxu0 0.0
    %269 = vmatpush1.msra.mxu0 0.0
    %270 = vmatprep.subr.mxu0 0.0
    %271 = vmatpush1.msra.mxu0 0.0
    %272 = vmatprep.subr.mxu0 0.0
    %273 = vmatpush1.msra.mxu0 0.0
    %274 = vmatprep.subr.mxu0 0.0
    %275 = vmatpush1.msra.mxu0 0.0
    %276 = vmatprep.subr.mxu0 0.0
    %277 = vmatpush1.msra.mxu0 0.0
    %278 = vmatprep.subr.mxu0 0.0
    %279 = vmatpush1.msra.mxu0 0.0
    %280 = vmatprep.subr.mxu0 0.0
    %281 = vmatpush1.msra.mxu0 0.0
    %282 = vmatprep.subr.mxu0 0.0
    %283 = vmatpush1.msra.mxu0 0.0
    %284 = vmatprep.subr.mxu0 0.0
    %285 = vmatpush1.msra.mxu0 0.0
    %286 = vmatprep.subr.mxu0 0.0
    %287 = vmatpush1.msra.mxu0 0.0
    %288 = vmatprep.subr.mxu0 0.0
    %289 = vmatpush1.msra.mxu0 0.0
    %290 = vmatprep.subr.mxu0 0.0
    %291 = vmatpush1.msra.mxu0 %v257
    %292 = vmatprep.subr.mxu0 0.0
    %293 = vmatpush1.msra.mxu0 %v256
    %294 = vmatprep.subr.mxu0 0.0
    %295 = vmatpush1.msra.mxu0 %v255
    %296 = vmatprep.subr.mxu0 0.0
    %297 = vmatpush1.msra.mxu0 %v254
    %298 = vmatprep.subr.mxu0 0.0
    %299 = vmatpush2.msra.mxu0 0.0
    %300 = vmatprep.subr.mxu0 0.0
    %301 = vmatpush2.msra.mxu0 0.0
    %302 = vmatprep.subr.mxu0 0.0
    %303 = vmatpush2.msra.mxu0 0.0
    %304 = vmatprep.subr.mxu0 0.0
    %305 = vmatpush2.msra.mxu0 0.0
    %306 = vmatprep.subr.mxu0 0.0
    %307 = vmatpush2.msra.mxu0 0.0
    %308 = vmatprep.subr.mxu0 0.0
    %309 = vmatpush2.msra.mxu0 0.0
    %310 = vmatprep.subr.mxu0 0.0
    %311 = vmatpush2.msra.mxu0 0.0
    %312 = vmatprep.subr.mxu0 0.0
    %313 = vmatpush2.msra.mxu0 0.0
    %314 = vmatprep.subr.mxu0 0.0
    %315 = vmatpush2.msra.mxu0 0.0
    %316 = vmatprep.subr.mxu0 0.0
    %317 = vmatpush2.msra.mxu0 0.0
    %318 = vmatprep.subr.mxu0 0.0
    %319 = vmatpush2.msra.mxu0 0.0
    %320 = vmatprep.subr.mxu0 0.0
    %321 = vmatpush2.msra.mxu0 0.0
    %322 = vmatprep.subr.mxu0 0.0
    %323 = vmatpush2.msra.mxu0 0.0
    %324 = vmatprep.subr.mxu0 0.0
    %325 = vmatpush2.msra.mxu0 0.0
    %326 = vmatprep.subr.mxu0 0.0
    %327 = vmatpush2.msra.mxu0 0.0
    %328 = vmatprep.subr.mxu0 0.0
    %329 = vmatpush2.msra.mxu0 0.0
    %330 = vmatprep.mubr.f32.mxu0 0.0
    %331 = vmatmul.mubr.f32.gmra.mxu0 %v264
    %v332 = vpop.f32.mrf.mxu0
    %v333 = vadd.f32 %v261, %v332
    %v334 = vpop.f32.mrf.mxu0
    %335 = vdwg.mxu0
    %v336 = vmax.f32 %v333, 0.0
    %v337 = vld [vmem:[%s4] sm:$0xff]
    %v338 = vld [vmem:[%s4 + $0x8] sm:$0xff]
    %v339 = vld [vmem:[%s4 + $0x10] sm:$0xff]
    %v340 = vld [vmem:[%s4 + $0x18] sm:$0xff]
    %v341 = vld [vmem:[%s4 + $0x20] sm:$0xff]
    %v342 = vld [vmem:[%s4 + $0x28] sm:$0xff]
    %v343 = vld [vmem:[%s4 + $0x30] sm:$0xff]
    %v344 = vld [vmem:[%s4 + $0x38] sm:$0xff]
    %v345 = vld [vmem:[%s4 + $0x40] sm:$0xff]
    %v346 = vld [vmem:[%s4 + $0x48] sm:$0xff]
    %v347 = vld [vmem:[%s4 + $0x50] sm:$0xff]
    %v348 = vld [vmem:[%s4 + $0x58] sm:$0xff]
    %v349 = vld [vmem:[%s4 + $0x60] sm:$0xff]
    %v350 = vld [vmem:[%s4 + $0x68] sm:$0xff]
    %v351 = vld [vmem:[%s4 + $0x70] sm:$0xff]
    %v352 = vld [vmem:[%s4 + $0x78] sm:$0xff]
    %v353 = vlaneseq
    %v354 = vshrl.u32 %v353, 7
    %v355 = vsub.s32 1, %v354
    %v356 = vrot.slane %v253, %v355
    %357 = vmatprep.subr.mxu0 0.0
    %358 = vmatpush1.msra.mxu0 %v352
    %359 = vmatprep.subr.mxu0 0.0
    %360 = vmatpush1.msra.mxu0 %v351
    %361 = vmatprep.subr.mxu0 0.0
    %362 = vmatpush1.msra.mxu0 %v350
    %363 = vmatprep.subr.mxu0 0.0
    %364 = vmatpush1.msra.mxu0 %v349
    %365 = vmatprep.subr.mxu0 0.0
    %366 = vmatpush1.msra.mxu0 %v348
    %367 = vmatprep.subr.mxu0 0.0
    %368 = vmatpush1.msra.mxu0 %v347
    %369 = vmatprep.subr.mxu0 0.0
    %370 = vmatpush1.msra.mxu0 %v346
    %371 = vmatprep.subr.mxu0 0.0
    %372 = vmatpush1.msra.mxu0 %v345
    %373 = vmatprep.subr.mxu0 0.0
    %374 = vmatpush1.msra.mxu0 %v344
    %375 = vmatprep.subr.mxu0 0.0
    %376 = vmatpush1.msra.mxu0 %v343
    %377 = vmatprep.subr.mxu0 0.0
    %378 = vmatpush1.msra.mxu0 %v342
    %379 = vmatprep.subr.mxu0 0.0
    %380 = vmatpush1.msra.mxu0 %v341
    %381 = vmatprep.subr.mxu0 0.0
    %382 = vmatpush1.msra.mxu0 %v340
    %383 = vmatprep.subr.mxu0 0.0
    %384 = vmatpush1.msra.mxu0 %v339
    %385 = vmatprep.subr.mxu0 0.0
    %386 = vmatpush1.msra.mxu0 %v338
    %387 = vmatprep.subr.mxu0 0.0
    %388 = vmatpush1.msra.mxu0 %v337
    %389 = vmatprep.subr.mxu0 0.0
    %390 = vmatpush2.msra.mxu0 0.0
    %391 = vmatprep.subr.mxu0 0.0
    %392 = vmatpush2.msra.mxu0 0.0
    %393 = vmatprep.subr.mxu0 0.0
    %394 = vmatpush2.msra.mxu0 0.0
    %395 = vmatprep.subr.mxu0 0.0
    %396 = vmatpush2.msra.mxu0 0.0
    %397 = vmatprep.subr.mxu0 0.0
    %398 = vmatpush2.msra.mxu0 0.0
    %399 = vmatprep.subr.mxu0 0.0
    %400 = vmatpush2.msra.mxu0 0.0
    %401 = vmatprep.subr.mxu0 0.0
    %402 = vmatpush2.msra.mxu0 0.0
    %403 = vmatprep.subr.mxu0 0.0
    %404 = vmatpush2.msra.mxu0 0.0
    %405 = vmatprep.subr.mxu0 0.0
    %406 = vmatpush2.msra.mxu0 0.0
    %407 = vmatprep.subr.mxu0 0.0
    %408 = vmatpush2.msra.mxu0 0.0
    %409 = vmatprep.subr.mxu0 0.0
    %410 = vmatpush2.msra.mxu0 0.0
    %411 = vmatprep.subr.mxu0 0.0
    %412 = vmatpush2.msra.mxu0 0.0
    %413 = vmatprep.subr.mxu0 0.0
    %414 = vmatpush2.msra.mxu0 0.0
    %415 = vmatprep.subr.mxu0 0.0
    %416 = vmatpush2.msra.mxu0 0.0
    %417 = vmatprep.subr.mxu0 0.0
    %418 = vmatpush2.msra.mxu0 0.0
    %419 = vmatprep.subr.mxu0 0.0
    %420 = vmatpush2.msra.mxu0 0.0
    %421 = vmatprep.mubr.f32.mxu0 0.0
    %422 = vmatmul.mubr.f32.gmra.mxu0 %v336
    %v423 = vpop.f32.mrf.mxu0
    %v424 = vadd.f32 %v356, %v423
    %v425 = vpop.f32.mrf.mxu0
    %426 = vdwg.mxu0
    %v427 = vmax.f32 %v424, 0.0
    %v428 = vld [vmem:[#allocation2] sm:$0xff]
    %v429 = vld [vmem:[#allocation2 + $0x8] sm:$0xff]
    %v430 = vld [vmem:[#allocation2 + $0x10] sm:$0xff]
    %v431 = vld [vmem:[#allocation2 + $0x18] sm:$0xff]
    %v432 = vld [vmem:[#allocation2 + $0x20] sm:$0xff]
    %v433 = vld [vmem:[#allocation2 + $0x28] sm:$0xff]
    %v434 = vld [vmem:[#allocation2 + $0x30] sm:$0xff]
    %v435 = vld [vmem:[#allocation2 + $0x38] sm:$0xff]
    %v436 = vld [vmem:[#allocation2 + $0x40] sm:$0xff]
    %v437 = vld [vmem:[#allocation2 + $0x48] sm:$0xff]
    %v438 = vld [vmem:[#allocation2 + $0x50] sm:$0xff]
    %v439 = vld [vmem:[#allocation2 + $0x58] sm:$0xff]
    %v440 = vld [vmem:[#allocation2 + $0x60] sm:$0xff]
    %v441 = vld [vmem:[#allocation2 + $0x68] sm:$0xff]
    %v442 = vld [vmem:[#allocation2 + $0x70] sm:$0xff]
    %v443 = vld [vmem:[#allocation2 + $0x78] sm:$0xff]
    %v444 = vlaneseq
    %v445 = vshrl.u32 %v444, 7
    %v446 = vsub.s32 2, %v445
    %v447 = vrot.slane %v253, %v446
    %448 = vmatprep.subr.mxu0 0.0
    %449 = vmatpush1.msra.mxu0 %v443
    %450 = vmatprep.subr.mxu0 0.0
    %451 = vmatpush1.msra.mxu0 %v442
    %452 = vmatprep.subr.mxu0 0.0
    %453 = vmatpush1.msra.mxu0 %v441
    %454 = vmatprep.subr.mxu0 0.0
    %455 = vmatpush1.msra.mxu0 %v440
    %456 = vmatprep.subr.mxu0 0.0
    %457 = vmatpush1.msra.mxu0 %v439
    %458 = vmatprep.subr.mxu0 0.0
    %459 = vmatpush1.msra.mxu0 %v438
    %460 = vmatprep.subr.mxu0 0.0
    %461 = vmatpush1.msra.mxu0 %v437
    %462 = vmatprep.subr.mxu0 0.0
    %463 = vmatpush1.msra.mxu0 %v436
    %464 = vmatprep.subr.mxu0 0.0
    %465 = vmatpush1.msra.mxu0 %v435
    %466 = vmatprep.subr.mxu0 0.0
    %467 = vmatpush1.msra.mxu0 %v434
    %468 = vmatprep.subr.mxu0 0.0
    %469 = vmatpush1.msra.mxu0 %v433
    %470 = vmatprep.subr.mxu0 0.0
    %471 = vmatpush1.msra.mxu0 %v432
    %472 = vmatprep.subr.mxu0 0.0
    %473 = vmatpush1.msra.mxu0 %v431
    %474 = vmatprep.subr.mxu0 0.0
    %475 = vmatpush1.msra.mxu0 %v430
    %476 = vmatprep.subr.mxu0 0.0
    %477 = vmatpush1.msra.mxu0 %v429
    %478 = vmatprep.subr.mxu0 0.0
    %479 = vmatpush1.msra.mxu0 %v428
    %480 = vmatprep.subr.mxu0 0.0
    %481 = vmatpush2.msra.mxu0 0.0
    %482 = vmatprep.subr.mxu0 0.0
    %483 = vmatpush2.msra.mxu0 0.0
    %484 = vmatprep.subr.mxu0 0.0
    %485 = vmatpush2.msra.mxu0 0.0
    %486 = vmatprep.subr.mxu0 0.0
    %487 = vmatpush2.msra.mxu0 0.0
    %488 = vmatprep.subr.mxu0 0.0
    %489 = vmatpush2.msra.mxu0 0.0
    %490 = vmatprep.subr.mxu0 0.0
    %491 = vmatpush2.msra.mxu0 0.0
    %492 = vmatprep.subr.mxu0 0.0
    %493 = vmatpush2.msra.mxu0 0.0
    %494 = vmatprep.subr.mxu0 0.0
    %495 = vmatpush2.msra.mxu0 0.0
    %496 = vmatprep.subr.mxu0 0.0
    %497 = vmatpush2.msra.mxu0 0.0
    %498 = vmatprep.subr.mxu0 0.0
    %499 = vmatpush2.msra.mxu0 0.0
    %500 = vmatprep.subr.mxu0 0.0
    %501 = vmatpush2.msra.mxu0 0.0
    %502 = vmatprep.subr.mxu0 0.0
    %503 = vmatpush2.msra.mxu0 0.0
    %504 = vmatprep.subr.mxu0 0.0
    %505 = vmatpush2.msra.mxu0 0.0
    %506 = vmatprep.subr.mxu0 0.0
    %507 = vmatpush2.msra.mxu0 0.0
    %508 = vmatprep.subr.mxu0 0.0
    %509 = vmatpush2.msra.mxu0 0.0
    %510 = vmatprep.subr.mxu0 0.0
    %511 = vmatpush2.msra.mxu0 0.0
    %512 = vmatprep.mubr.f32.mxu0 0.0
    %513 = vmatmul.mubr.f32.gmra.mxu0 %v427
    %v514 = vpop.f32.mrf.mxu0
    %v515 = vadd.f32 %v447, %v514
    %v516 = vpop.f32.mrf.mxu0
    %517 = vdwg.mxu0
    %518 = vst [vmem:[#allocation5] sm:$0xff] %v515
    // Predicated region
    $region34: #{tpu_custom_call.1} parent=1 // pred_check
      _
    $region35: #{tpu_custom_call.1} parent=1 // pred_check_branch
      %520 = sbr.rel (0) target = $region37
    $region36: #{tpu_custom_call.1} parent=1 // pred_region
      %s522 = ssub.s32 128, 128
      %523 = vsyncadd [#allocation4], %s522
      %s525 = sshll.u32 [#allocation5], 4
      %s526 = int_to_ptr.vmem [resolvable:$true] %s525
      %528 = dma.vmem_to_hbm [thread:$0]  %s526, 128, %s7, [#allocation4]
    $region37: #{tpu_custom_call.1} parent=1 // pred_fallthru
      _
    // Predicated region
    $region38: #{tpu_custom_call.1} parent=1 // pred_check
      _
    $region39: #{tpu_custom_call.1} parent=1 // pred_check_branch
      %530 = sbr.rel (0) target = $region41
    $region40: #{tpu_custom_call.1} parent=1 // pred_region
      %531 = dma.done [#allocation4], 128
    $region41: #{tpu_custom_call.1} parent=1 // pred_fallthru
      _
    %532 = vsyncpa [#allocation3], 1
    %533 = vsyncpa [#allocation4], 1

</llo_original>
